<compile_context>
chip_gen: v7x
topology: tpu7x:2x2x1
jax: 0.10.0
libtpu: 0.0.40
codegen_flags: <defaults>
</compile_context>

<pallas_src>
import functools

import jax
import jax.numpy as jnp
from jax.experimental import pallas as pl
from jax.experimental.pallas import tpu as pltpu


# ---------------------------------------------------------------------------
# Kernel
# ---------------------------------------------------------------------------
def _yolo_kernel(p_ref, off_ref, mul_ref, chan_ref, out_ref, *, stride):
    """Decode one (nb, R, g) block of raw YOLO predictions, R = A*(C+5).

    p_ref    : VMEM (nb, R, g)   raw conv output (native dtype)
    off_ref  : VMEM (8, g)  f32  row 0 = grid_x, row 1 = grid_y, rows 2..7 = 0
    mul_ref  : VMEM (R, 1)  f32  anchor_w / anchor_h (pixels) on w/h rows, 1.0 elsewhere
    chan_ref : VMEM (R, 1)  i32  per-row channel index (row % (C+5))
    out_ref  : VMEM (nb, R, g)   decoded predictions (channel-major, lane-dense)
    """
    p = p_ref[...].astype(jnp.float32)            # (nb, R, g)
    sig = jax.nn.sigmoid(p)                       # needed on x/y/conf/class rows

    chan = chan_ref[...]                          # (R, 1)
    is_x = (chan == 0)[None]                      # (1, R, 1)
    is_xy = (chan < 2)[None]
    is_box = (chan < 4)[None]

    gx = off_ref[0:1, :][None]                    # (1, 1, g)
    gy = off_ref[1:2, :][None]

    # Offset only matters on rows 0/1; other rows receive gy but are discarded
    # by the outer select, so a single where suffices.
    off = jnp.where(is_x, gx, gy)                 # (1, R, g)
    box_xy = (sig + off) * stride

    # exp runs full-tile (free EUP filler for this HBM-bound kernel); mul is 1.0
    # on non-w/h rows so a stray inf never meets a 0 (no NaN) and the select
    # below discards those lanes.  Do NOT change the 1.0 padding or select order.
    box_wh = jnp.exp(p) * mul_ref[...][None]      # (nb, R, g)

    dec = jnp.where(is_xy, box_xy, jnp.where(is_box, box_wh, sig))
    out_ref[...] = dec.astype(out_ref.dtype)      # single unmasked lane-dense store


# ---------------------------------------------------------------------------
# Generation-aware tiling helpers
# ---------------------------------------------------------------------------
def _tpu_generation():
    """Return (physical VMEM bytes, TensorCores usable by one Pallas program)."""
    try:
        kind = jax.devices()[0].device_kind.lower()
    except Exception:
        kind = ""
    vmem = (64 << 20) if ("v7" in kind or "7x" in kind) else (128 << 20)
    try:
        vmem = int(pltpu.get_tpu_info().vmem_capacity_bytes)
    except Exception:
        pass
    if "lite" in kind or "v5e" in kind or "v6e" in kind:
        cores = 1            # v5e / v6e: single TensorCore per chip
    elif any(t in kind for t in ("v4", "v5p", "v7", "7x")):
        cores = 2            # v4/v5p megacore, v7x: 2 TensorCores
    else:
        cores = 1
    return vmem, cores


def _largest_divisor_leq(n, cap):
    cap = max(1, min(n, cap))
    for d in range(cap, 0, -1):
        if n % d == 0:
            return d
    return 1


def _choose_tiling(n, rows, gg, in_itemsize, out_itemsize, budget_live_bytes, cores):
    """Pick (batch block nb, lane block gblk).

    Double-buffered live VMEM for the two main streams is 2*(in_block+out_block),
    so the budget is divided by 2 (fixes the old x4 accounting).  Single-TC chips
    (v5e/v6e) take the largest block that fits; 2-TC chips additionally guarantee
    >= `cores` grid steps so both cores get work.
    """
    per_sample = rows * gg * (in_itemsize + out_itemsize)
    max_nb = max(1, int(budget_live_bytes // max(1, 2 * per_sample)))
    nb = _largest_divisor_leq(n, max_nb)
    if cores > 1 and n // nb < cores and n >= cores:
        nb = _largest_divisor_leq(n, n // cores)

    def fits(blk):
        return 2 * nb * rows * blk * (in_itemsize + out_itemsize) <= budget_live_bytes

    gblk = gg
    need_fit = not fits(gg)
    need_cores = cores > 1 and (n // nb) < cores
    if need_fit or need_cores:
        for split in range(2, gg + 1):
            if gg % split:
                continue
            chunk = gg // split
            if chunk % 128:
                continue          # last-dim blocks must stay multiples of 128
            if (not need_fit or fits(chunk)) and \
               (not need_cores or (n // nb) * split >= cores):
                gblk = chunk
                break
    return nb, gblk


# ---------------------------------------------------------------------------
# Forward
# ---------------------------------------------------------------------------
def yolo_layer_forward(x, anchors, num_classes, img_dim=416, *,
                       out_dtype=None, channel_major=False):
    """Pallas implementation of YOLOLayer.forward(x, targets=None, img_dim=img_dim).

    channel_major=False (default): PyTorch-compatible (N, A*G*G, C+5) output.
    channel_major=True: returns (N, A, C+5, G, G) with no post-kernel permute
    (no extra HBM pass) for consumers that accept channel-major data.
    """
    N, Ch, G, G2 = x.shape
    assert G == G2
    A = anchors.shape[0]
    C5 = num_classes + 5
    assert Ch == A * C5, "channels must equal num_anchors * (num_classes + 5)"
    R = A * C5
    gg = G * G
    stride = float(img_dim) / float(G)
    if out_dtype is None:
        out_dtype = x.dtype            # follow input dtype; no forced f32 stream

    # ---- small constants, computed once, resident in VMEM across grid steps ----
    idx = jnp.arange(gg, dtype=jnp.int32)
    off = jnp.zeros((8, gg), jnp.float32)                   # 8 rows: sublane-aligned
    off = off.at[0].set((idx % G).astype(jnp.float32))      # grid_x
    off = off.at[1].set((idx // G).astype(jnp.float32))     # grid_y

    anchors_f = anchors.astype(jnp.float32)
    # exp(w) * (anchor/stride) * stride == exp(w) * anchor  -> use pixel anchors.
    mul = jnp.ones((A, C5), jnp.float32)
    mul = mul.at[:, 2].set(anchors_f[:, 0]).at[:, 3].set(anchors_f[:, 1])
    mul = mul.reshape(R, 1)
    chan = (jnp.arange(R, dtype=jnp.int32) % C5).reshape(R, 1)

    # native dtype in (cast inside the kernel), flattened to one 3-D slab (free reshape)
    xr = x.reshape(N, R, gg)

    vmem_cap, cores = _tpu_generation()
    budget_live = max(8 << 20, vmem_cap // 2 - (8 << 20))
    out_itemsize = jnp.dtype(out_dtype).itemsize
    nb, gblk = _choose_tiling(N, R, gg, x.dtype.itemsize, out_itemsize,
                              budget_live, cores)

    const_bytes = (off.size + mul.size + chan.size) * 4
    live = 2 * nb * R * gblk * (x.dtype.itemsize + out_itemsize) + 2 * const_bytes
    vmem_limit = int(min(max(vmem_cap - (8 << 20), 16 << 20),
                         max(32 << 20, live + (8 << 20))))

    kern = functools.partial(_yolo_kernel, stride=stride)
    out = pl.pallas_call(
        kern,
        out_shape=jax.ShapeDtypeStruct((N, R, gg), out_dtype),
        grid=(N // nb, gg // gblk),
        in_specs=[
            pl.BlockSpec((nb, R, gblk), lambda i, j: (i, 0, j)),   # predictions
            pl.BlockSpec((8, gblk), lambda i, j: (0, j)),          # grid_x / grid_y
            pl.BlockSpec((R, 1), lambda i, j: (0, 0)),             # anchor multipliers
            pl.BlockSpec((R, 1), lambda i, j: (0, 0)),             # per-row channel idx
        ],
        out_specs=pl.BlockSpec((nb, R, gblk), lambda i, j: (i, 0, j)),
        compiler_params=pltpu.CompilerParams(
            dimension_semantics=("parallel", "parallel"),
            vmem_limit_bytes=vmem_limit),
    )(xr, off, mul, chan)

    if channel_major:
        # No extra HBM pass: consumer takes channel-major data directly.
        return out.reshape(N, A, C5, G, G), 0

    # PyTorch-compatible (N, A*G*G, C+5) layout.  Kept as a plain-JAX permute on
    # purpose: an in-kernel transpose would make the output lane dim C+5 < 128
    # and force masked/strided stores (perf review).  Use channel_major=True to
    # skip this pass entirely when the consumer allows it.
    out = (out.reshape(N, A, C5, G, G)
              .transpose(0, 1, 3, 4, 2)
              .reshape(N, A * gg, C5))
    return out, 0


# ---------------------------------------------------------------------------
# Pure-JAX reference (mirrors the PyTorch forward, targets=None)
# ---------------------------------------------------------------------------
def yolo_layer_ref(x, anchors, num_classes, img_dim=416):
    N, Ch, G, _ = x.shape
    A = anchors.shape[0]
    C5 = num_classes + 5
    stride = float(img_dim) / float(G)

    pred = x.astype(jnp.float32).reshape(N, A, C5, G, G).transpose(0, 1, 3, 4, 2)
    sx = jax.nn.sigmoid(pred[..., 0])
    sy = jax.nn.sigmoid(pred[..., 1])
    w = pred[..., 2]
    h = pred[..., 3]
    conf = jax.nn.sigmoid(pred[..., 4])
    cls = jax.nn.sigmoid(pred[..., 5:])

    gx = jnp.tile(jnp.arange(G), (G, 1)).reshape(1, 1, G, G).astype(jnp.float32)
    gy = jnp.tile(jnp.arange(G), (G, 1)).T.reshape(1, 1, G, G).astype(jnp.float32)
    scaled = anchors.astype(jnp.float32) / stride
    aw = scaled[:, 0].reshape(1, A, 1, 1)
    ah = scaled[:, 1].reshape(1, A, 1, 1)

    bx = sx + gx
    by = sy + gy
    bw = jnp.exp(w) * aw
    bh = jnp.exp(h) * ah
    boxes = jnp.stack([bx, by, bw, bh], axis=-1)

    out = jnp.concatenate(
        [boxes.reshape(N, -1, 4) * stride,
         conf.reshape(N, -1, 1),
         cls.reshape(N, -1, num_classes)], axis=-1)
    return out, 0


if __name__ == "__main__":
    # Deterministic small config consistent with the module:
    #   num_anchors = 3, num_classes = 3  ->  channels = 3 * (3 + 5) = 24
    num_classes = 3
    anchors = jnp.array([[116., 90.], [156., 198.], [373., 326.]],
                        dtype=jnp.float32)
    N, G, img_dim = 2, 16, 416
    A = anchors.shape[0]
    C5 = num_classes + 5

    key = jax.random.PRNGKey(0)
    x = jax.random.normal(key, (N, A * C5, G, G), dtype=jnp.float32)

    out, zero = yolo_layer_forward(x, anchors, num_classes, img_dim=img_dim)
    out = jax.block_until_ready(out)

    ref, _ = yolo_layer_ref(x, anchors, num_classes, img_dim=img_dim)
    ref = jax.block_until_ready(ref)

    assert out.shape == (N, A * G * G, C5), out.shape
    assert jnp.allclose(out, ref, atol=1e-4, rtol=1e-4), "mismatch vs reference"
    assert zero == 0

    # Fast path: consumer accepts channel-major output (no post-kernel permute).
    cm, _ = yolo_layer_forward(x, anchors, num_classes, img_dim=img_dim,
                               channel_major=True)
    cm = jax.block_until_ready(cm)
    cm_as_torch = cm.transpose(0, 1, 3, 4, 2).reshape(N, A * G * G, C5)
    assert jnp.allclose(cm_as_torch, ref, atol=1e-4, rtol=1e-4), "channel_major mismatch"

    print("KERNEL_OK")
</pallas_src>

<mosaic_0001>
module attributes {stable_mosaic.version = 11 : i64} {
  func.func @_yolo_kernel(%arg0: i32, %arg1: i32, %arg2: memref<2x24x256xf32, #tpu.memory_space<vmem>>, %arg3: memref<8x256xf32, #tpu.memory_space<vmem>>, %arg4: memref<24x1xf32, #tpu.memory_space<vmem>>, %arg5: memref<24x1xi32, #tpu.memory_space<vmem>>, %arg6: memref<2x24x256xf32, #tpu.memory_space<vmem>>) attributes {dimension_semantics = [#tpu.dimension_semantics<parallel>, #tpu.dimension_semantics<parallel>], iteration_bounds = array<i64: 1, 1>, scalar_prefetch = 0 : i64, scratch_operands = 0 : i64, tpu.core_type = #tpu.core_type<tc>, window_params = [{transform_indices = @transform_0, window_bounds = array<i64: 2, 24, 256>}, {transform_indices = @transform_1, window_bounds = array<i64: 8, 256>}, {pipeline_mode = #tpu.pipeline_mode<synchronous>, transform_indices = @transform_2, window_bounds = array<i64: 24, 1>}, {pipeline_mode = #tpu.pipeline_mode<synchronous>, transform_indices = @transform_3, window_bounds = array<i64: 24, 1>}, {transform_indices = @transform_4, window_bounds = array<i64: 2, 24, 256>}]} {
    %c0 = arith.constant 0 : index
    %c0_0 = arith.constant 0 : index
    %c0_1 = arith.constant 0 : index
    %0 = vector.load %arg2[%c0, %c0_0, %c0_1] : memref<2x24x256xf32, #tpu.memory_space<vmem>>, vector<2x24x256xf32>
    %1 = arith.negf %0 : vector<2x24x256xf32>
    %2 = math.exp %1 : vector<2x24x256xf32>
    %cst = arith.constant 1.000000e+00 : f32
    %3 = vector.broadcast %cst : f32 to vector<2x24x256xf32>
    %4 = arith.addf %3, %2 : vector<2x24x256xf32>
    %5 = arith.divf %3, %4 : vector<2x24x256xf32>
    %c0_2 = arith.constant 0 : index
    %c0_3 = arith.constant 0 : index
    %6 = vector.load %arg5[%c0_2, %c0_3] : memref<24x1xi32, #tpu.memory_space<vmem>>, vector<24x1xi32>
    %c0_i32 = arith.constant 0 : i32
    %7 = vector.broadcast %c0_i32 : i32 to vector<24x1xi32>
    %8 = arith.cmpi eq, %6, %7 : vector<24x1xi32>
    %9 = vector.shape_cast %8 : vector<24x1xi1> to vector<1x24x1xi1>
    %c2_i32 = arith.constant 2 : i32
    %10 = vector.broadcast %c2_i32 : i32 to vector<24x1xi32>
    %11 = arith.cmpi slt, %6, %10 : vector<24x1xi32>
    %12 = vector.shape_cast %11 : vector<24x1xi1> to vector<1x24x1xi1>
    %c4_i32 = arith.constant 4 : i32
    %13 = vector.broadcast %c4_i32 : i32 to vector<24x1xi32>
    %14 = arith.cmpi slt, %6, %13 : vector<24x1xi32>
    %15 = vector.shape_cast %14 : vector<24x1xi1> to vector<1x24x1xi1>
    %c0_4 = arith.constant 0 : index
    %c0_5 = arith.constant 0 : index
    %16 = vector.load %arg3[%c0_4, %c0_5] : memref<8x256xf32, #tpu.memory_space<vmem>>, vector<1x256xf32>
    %17 = vector.shape_cast %16 : vector<1x256xf32> to vector<1x1x256xf32>
    %c1 = arith.constant 1 : index
    %c0_6 = arith.constant 0 : index
    %18 = vector.load %arg3[%c1, %c0_6] : memref<8x256xf32, #tpu.memory_space<vmem>>, vector<1x256xf32>
    %19 = vector.shape_cast %18 : vector<1x256xf32> to vector<1x1x256xf32>
    %20 = vector.shape_cast %9 : vector<1x24x1xi1> to vector<1x24x1xi1>
    %21 = vector.broadcast %20 : vector<1x24x1xi1> to vector<1x24x256xi1>
    %22 = vector.shape_cast %17 : vector<1x1x256xf32> to vector<1x1x256xf32>
    %23 = vector.broadcast %22 : vector<1x1x256xf32> to vector<1x24x256xf32>
    %24 = vector.shape_cast %19 : vector<1x1x256xf32> to vector<1x1x256xf32>
    %25 = vector.broadcast %24 : vector<1x1x256xf32> to vector<1x24x256xf32>
    %26 = arith.select %21, %23, %25 : vector<1x24x256xi1>, vector<1x24x256xf32>
    %27 = vector.broadcast %26 : vector<1x24x256xf32> to vector<2x24x256xf32>
    %28 = arith.addf %5, %27 : vector<2x24x256xf32>
    %cst_7 = arith.constant 2.600000e+01 : f32
    %29 = vector.broadcast %cst_7 : f32 to vector<2x24x256xf32>
    %30 = arith.mulf %28, %29 : vector<2x24x256xf32>
    %31 = math.exp %0 : vector<2x24x256xf32>
    %c0_8 = arith.constant 0 : index
    %c0_9 = arith.constant 0 : index
    %32 = vector.load %arg4[%c0_8, %c0_9] : memref<24x1xf32, #tpu.memory_space<vmem>>, vector<24x1xf32>
    %33 = vector.shape_cast %32 : vector<24x1xf32> to vector<1x24x1xf32>
    %34 = vector.broadcast %33 : vector<1x24x1xf32> to vector<2x24x256xf32>
    %35 = arith.mulf %31, %34 : vector<2x24x256xf32>
    %36 = vector.shape_cast %15 : vector<1x24x1xi1> to vector<1x24x1xi1>
    %37 = vector.broadcast %36 : vector<1x24x1xi1> to vector<2x24x256xi1>
    %38 = arith.select %37, %35, %5 : vector<2x24x256xi1>, vector<2x24x256xf32>
    %39 = vector.shape_cast %12 : vector<1x24x1xi1> to vector<1x24x1xi1>
    %40 = vector.broadcast %39 : vector<1x24x1xi1> to vector<2x24x256xi1>
    %41 = arith.select %40, %30, %38 : vector<2x24x256xi1>, vector<2x24x256xf32>
    %c0_10 = arith.constant 0 : index
    %c0_11 = arith.constant 0 : index
    %c0_12 = arith.constant 0 : index
    %42 = vector.load %arg6[%c0_10, %c0_11, %c0_12] : memref<2x24x256xf32, #tpu.memory_space<vmem>>, vector<2x24x256xf32>
    tpu.vector_store %arg6[%c0_10, %c0_11, %c0_12], %41 {strides = array<i32>} : memref<2x24x256xf32, #tpu.memory_space<vmem>>, vector<2x24x256xf32>,
    return
  }
  func.func @transform_0(%arg0: i32, %arg1: i32) -> (i32, i32, i32) {
    %c0_i32 = arith.constant 0 : i32
    %c0_i32_0 = arith.constant 0 : i32
    return %arg0, %c0_i32, %arg1 : i32, i32, i32
  }
  func.func @transform_1(%arg0: i32, %arg1: i32) -> (i32, i32) {
    %c0_i32 = arith.constant 0 : i32
    %c0_i32_0 = arith.constant 0 : i32
    return %c0_i32, %arg1 : i32, i32
  }
  func.func @transform_2(%arg0: i32, %arg1: i32) -> (i32, i32) {
    %c0_i32 = arith.constant 0 : i32
    %c0_i32_0 = arith.constant 0 : i32
    %c0_i32_1 = arith.constant 0 : i32
    return %c0_i32, %c0_i32_0 : i32, i32
  }
  func.func @transform_3(%arg0: i32, %arg1: i32) -> (i32, i32) {
    %c0_i32 = arith.constant 0 : i32
    %c0_i32_0 = arith.constant 0 : i32
    %c0_i32_1 = arith.constant 0 : i32
    return %c0_i32, %c0_i32_0 : i32, i32
  }
  func.func @transform_4(%arg0: i32, %arg1: i32) -> (i32, i32, i32) {
    %c0_i32 = arith.constant 0 : i32
    %c0_i32_0 = arith.constant 0 : i32
    return %arg0, %c0_i32, %arg1 : i32, i32, i32
  }
}

</mosaic_0001>

<llo_original>
// kernel: tpu_custom_call.1
$region0: #{tpu_custom_call.1}
  #allocation0 [shape = 'u32[]', space=smem, size = 0x4, offset = 0x4, fixed_abs, tag = 'smem constant byte address 0x4 - core index']
  #allocation1 [shape = 'u32[144,128]{1,0:T(1,128)}', space=vmem, size = 0x12000, scoped, tag = 'internal scratch']
  %s0 = inlined_call_operand.hbm [shape: f32[2,24,256], index: 0, kind: input, shape index: {}]
  %s1 = inlined_call_operand.vmem [shape: f32[8,256], index: 1, kind: input, shape index: {}]
  %s2 = inlined_call_operand.vmem [shape: f32[24,1], index: 2, kind: input, shape index: {}]
  %s3 = inlined_call_operand.vmem [shape: s32[24,1], index: 3, kind: input, shape index: {}]
  %s4 = inlined_call_operand.hbm [shape: f32[2,24,256], index: 4, kind: output, shape index: {}]
  %s5 = sld [smem:[#allocation0]]
  $region30: #{tpu_custom_call.1} parent=0
    _
  %s7 = ssub.s32 1, %s5
  %s8 = scalar_select 0, %s7, %s5
  $region1: #{tpu_custom_call.1} parent=0
    #allocation2 [shape = 'u8[49152]{0}', space=vmem, size = 0xc000, scoped, tag = 'input window, operand 0, single buffered']
    #allocation3 [shape = 's32[1]{0}', space=sflag, size = 0x4, scoped, tag = 'scoped memory for tpu_custom_call.1']
    #allocation4 [shape = 's32[1]{0}', space=sflag, size = 0x4, scoped, tag = 'scoped memory for tpu_custom_call.1']
    #allocation5 [shape = 'u8[49152]{0}', space=vmem, size = 0xc000, scoped, tag = 'output window, operand 0, single buffered']
    %9 = vsyncpa [#allocation3], 0
    %10 = vsyncpa [#allocation4], 0
    // Predicated region
    $region2: #{tpu_custom_call.1} parent=1 // pred_check
      _
    $region3: #{tpu_custom_call.1} parent=1 // pred_check_branch
      %12 = sbr.rel (0) target = $region5
    $region4: #{tpu_custom_call.1} parent=1 // pred_region
      %s14 = ssub.s32 1536, 1536
      %15 = vsyncadd [#allocation3], %s14
      %s16 = sshll.u32 [#allocation2], 4
      %s17 = int_to_ptr.vmem [resolvable:$true] %s16
      %22 = dma.hbm_to_vmem [thread:$0]  %s0, 1536, %s17, [#allocation3], 256, 256, 16
    $region5: #{tpu_custom_call.1} parent=1 // pred_fallthru
      _
    // Predicated region
    $region6: #{tpu_custom_call.1} parent=1 // pred_check
      _
    $region7: #{tpu_custom_call.1} parent=1 // pred_check_branch
      %24 = sbr.rel (0) target = $region9
    $region8: #{tpu_custom_call.1} parent=1 // pred_region
      _
    $region9: #{tpu_custom_call.1} parent=1 // pred_fallthru
      _
    // Predicated region
    $region10: #{tpu_custom_call.1} parent=1 // pred_check
      _
    $region11: #{tpu_custom_call.1} parent=1 // pred_check_branch
      %26 = sbr.rel (0) target = $region13
    $region12: #{tpu_custom_call.1} parent=1 // pred_region
      _
    $region13: #{tpu_custom_call.1} parent=1 // pred_fallthru
      _
    // Predicated region
    $region14: #{tpu_custom_call.1} parent=1 // pred_check
      _
    $region15: #{tpu_custom_call.1} parent=1 // pred_check_branch
      %28 = sbr.rel (0) target = $region17
    $region16: #{tpu_custom_call.1} parent=1 // pred_region
      _
    $region17: #{tpu_custom_call.1} parent=1 // pred_fallthru
      _
    // Predicated region
    $region18: #{tpu_custom_call.1} parent=1 // pred_check
      _
    $region19: #{tpu_custom_call.1} parent=1 // pred_check_branch
      %30 = sbr.rel (0) target = $region21
    $region20: #{tpu_custom_call.1} parent=1 // pred_region
      %31 = dma.done [#allocation3], 1536
    $region21: #{tpu_custom_call.1} parent=1 // pred_fallthru
      _
    %v32 = vld [vmem:[#allocation2] sm:$0xff]
    %v33 = vld [vmem:[#allocation2 + $0x8] sm:$0xff]
    %v34 = vld [vmem:[#allocation2 + $0x10] sm:$0xff]
    %v35 = vld [vmem:[#allocation2 + $0x18] sm:$0xff]
    %v36 = vld [vmem:[#allocation2 + $0x20] sm:$0xff]
    %v37 = vld [vmem:[#allocation2 + $0x28] sm:$0xff]
    %v38 = vld [vmem:[#allocation2 + $0x30] sm:$0xff]
    %v39 = vld [vmem:[#allocation2 + $0x38] sm:$0xff]
    %v40 = vld [vmem:[#allocation2 + $0x40] sm:$0xff]
    %v41 = vld [vmem:[#allocation2 + $0x48] sm:$0xff]
    %v42 = vld [vmem:[#allocation2 + $0x50] sm:$0xff]
    %v43 = vld [vmem:[#allocation2 + $0x58] sm:$0xff]
    %v44 = vxor.u32 %v32, 2147483648
    %v45 = vxor.u32 %v33, 2147483648
    %v46 = vxor.u32 %v34, 2147483648
    %v47 = vxor.u32 %v35, 2147483648
    %v48 = vxor.u32 %v36, 2147483648
    %v49 = vxor.u32 %v37, 2147483648
    %v50 = vxor.u32 %v38, 2147483648
    %v51 = vxor.u32 %v39, 2147483648
    %v52 = vxor.u32 %v40, 2147483648
    %v53 = vxor.u32 %v41, 2147483648
    %v54 = vxor.u32 %v42, 2147483648
    %v55 = vxor.u32 %v43, 2147483648
    %v56 = vmul.f32 %v44, 1.442695
    %v57 = vpow.pop %v56
    %v58 = vmul.f32 %v45, 1.442695
    %v59 = vpow.pop %v58
    %v60 = vmul.f32 %v46, 1.442695
    %v61 = vpow.pop %v60
    %v62 = vmul.f32 %v47, 1.442695
    %v63 = vpow.pop %v62
    %v64 = vmul.f32 %v48, 1.442695
    %v65 = vpow.pop %v64
    %v66 = vmul.f32 %v49, 1.442695
    %v67 = vpow.pop %v66
    %v68 = vmul.f32 %v50, 1.442695
    %v69 = vpow.pop %v68
    %v70 = vmul.f32 %v51, 1.442695
    %v71 = vpow.pop %v70
    %v72 = vmul.f32 %v52, 1.442695
    %v73 = vpow.pop %v72
    %v74 = vmul.f32 %v53, 1.442695
    %v75 = vpow.pop %v74
    %v76 = vmul.f32 %v54, 1.442695
    %v77 = vpow.pop %v76
    %v78 = vmul.f32 %v55, 1.442695
    %v79 = vpow.pop %v78
    %v80 = vadd.f32 %v57, 1.0
    %v81 = vadd.f32 %v59, 1.0
    %v82 = vadd.f32 %v61, 1.0
    %v83 = vadd.f32 %v63, 1.0
    %v84 = vadd.f32 %v65, 1.0
    %v85 = vadd.f32 %v67, 1.0
    %v86 = vadd.f32 %v69, 1.0
    %v87 = vadd.f32 %v71, 1.0
    %v88 = vadd.f32 %v73, 1.0
    %v89 = vadd.f32 %v75, 1.0
    %v90 = vadd.f32 %v77, 1.0
    %v91 = vadd.f32 %v79, 1.0
    %v92 = vrcp.pop %v80
    %v93 = vmul.f32 1.0, %v92
    %v94 = vrcp.pop %v81
    %v95 = vmul.f32 1.0, %v94
    %v96 = vrcp.pop %v82
    %v97 = vmul.f32 1.0, %v96
    %v98 = vrcp.pop %v83
    %v99 = vmul.f32 1.0, %v98
    %v100 = vrcp.pop %v84
    %v101 = vmul.f32 1.0, %v100
    %v102 = vrcp.pop %v85
    %v103 = vmul.f32 1.0, %v102
    %v104 = vrcp.pop %v86
    %v105 = vmul.f32 1.0, %v104
    %v106 = vrcp.pop %v87
    %v107 = vmul.f32 1.0, %v106
    %v108 = vrcp.pop %v88
    %v109 = vmul.f32 1.0, %v108
    %v110 = vrcp.pop %v89
    %v111 = vmul.f32 1.0, %v110
    %v112 = vrcp.pop %v90
    %v113 = vmul.f32 1.0, %v112
    %v114 = vrcp.pop %v91
    %v115 = vmul.f32 1.0, %v114
    %v116 = vld [vmem:[%s3] sm:$0xff]
    %v117 = vld [vmem:[%s3 + $0x8] sm:$0xff]
    %v118 = vld [vmem:[%s3 + $0x10] sm:$0xff]
    %vm119 = vcmp.eq.s32.totalorder %v116, 0
    %vm120 = vcmp.eq.s32.totalorder %v117, 0
    %vm121 = vcmp.eq.s32.totalorder %v118, 0
    %vm122 = vcmp.lt.s32.totalorder %v116, 2
    %vm123 = vcmp.lt.s32.totalorder %v117, 2
    %vm124 = vcmp.lt.s32.totalorder %v118, 2
    %vm125 = vcmp.lt.s32.totalorder %v116, 4
    %vm126 = vcmp.lt.s32.totalorder %v117, 4
    %vm127 = vcmp.lt.s32.totalorder %v118, 4
    %v128 = vld [vmem:[%s1] ss:$8 sm:$0x3]
    %s129 = scalar_lea.vmem %s1, 1
    %v130 = vld [vmem:[%s129] ss:$8 sm:$0x3]
    %v131 = vsel %vm119, 1, 0
    %v132 = vsel %vm120, 1, 0
    %v133 = vsel %vm121, 1, 0
    %134 = vset.pattern.permute.xlu0 0
    %135 = vperm.xlu0 %134, %v131
    %v136 = vpop.permute.xlu0 %135
    %137 = vset.pattern.permute.xlu0 0
    %138 = vperm.xlu0 %137, %v132
    %v139 = vpop.permute.xlu0 %138
    %140 = vset.pattern.permute.xlu0 0
    %141 = vperm.xlu0 %140, %v133
    %v142 = vpop.permute.xlu0 %141
    %vm143 = vcmp.eq.s32.totalorder %v136, 1
    %vm144 = vcmp.eq.s32.totalorder %v139, 1
    %vm145 = vcmp.eq.s32.totalorder %v142, 1
    %v147 = vlaneseq
    %v148 = vshrl.u32 %v147, 7
    %v149 = vsub.s32 0, %v148
    %v150 = vrot.slane %v128, %v149
    %v151 = vlaneseq
    %v152 = vshrl.u32 %v151, 7
    %v153 = vsub.s32 1, %v152
    %v154 = vrot.slane %v128, %v153
    %v158 = vlaneseq
    %v159 = vshrl.u32 %v158, 7
    %v160 = vsub.s32 0, %v159
    %v161 = vrot.slane %v130, %v160
    %v162 = vlaneseq
    %v163 = vshrl.u32 %v162, 7
    %v164 = vsub.s32 1, %v163
    %v165 = vrot.slane %v130, %v164
    %v168 = vsel %vm143, %v150, %v161
    %v169 = vsel %vm143, %v154, %v165
    %v170 = vsel %vm144, %v150, %v161
    %v171 = vsel %vm144, %v154, %v165
    %v172 = vsel %vm145, %v150, %v161
    %v173 = vsel %vm145, %v154, %v165
    %v174 = vadd.f32 %v93, %v168
    %v175 = vadd.f32 %v95, %v169
    %v176 = vadd.f32 %v97, %v170
    %v177 = vadd.f32 %v99, %v171
    %v178 = vadd.f32 %v101, %v172
    %v179 = vadd.f32 %v103, %v173
    %v180 = vadd.f32 %v105, %v168
    %v181 = vadd.f32 %v107, %v169
    %v182 = vadd.f32 %v109, %v170
    %v183 = vadd.f32 %v111, %v171
    %v184 = vadd.f32 %v113, %v172
    %v185 = vadd.f32 %v115, %v173
    %v186 = vmul.f32 %v174, 26.0
    %v187 = vmul.f32 %v175, 26.0
    %v188 = vmul.f32 %v176, 26.0
    %v189 = vmul.f32 %v177, 26.0
    %v190 = vmul.f32 %v178, 26.0
    %v191 = vmul.f32 %v179, 26.0
    %v192 = vmul.f32 %v180, 26.0
    %v193 = vmul.f32 %v181, 26.0
    %v194 = vmul.f32 %v182, 26.0
    %v195 = vmul.f32 %v183, 26.0
    %v196 = vmul.f32 %v184, 26.0
    %v197 = vmul.f32 %v185, 26.0
    %v198 = vmul.f32 %v32, 1.442695
    %v199 = vpow.pop %v198
    %v200 = vmul.f32 %v33, 1.442695
    %v201 = vpow.pop %v200
    %v202 = vmul.f32 %v34, 1.442695
    %v203 = vpow.pop %v202
    %v204 = vmul.f32 %v35, 1.442695
    %v205 = vpow.pop %v204
    %v206 = vmul.f32 %v36, 1.442695
    %v207 = vpow.pop %v206
    %v208 = vmul.f32 %v37, 1.442695
    %v209 = vpow.pop %v208
    %v210 = vmul.f32 %v38, 1.442695
    %v211 = vpow.pop %v210
    %v212 = vmul.f32 %v39, 1.442695
    %v213 = vpow.pop %v212
    %v214 = vmul.f32 %v40, 1.442695
    %v215 = vpow.pop %v214
    %v216 = vmul.f32 %v41, 1.442695
    %v217 = vpow.pop %v216
    %v218 = vmul.f32 %v42, 1.442695
    %v219 = vpow.pop %v218
    %v220 = vmul.f32 %v43, 1.442695
    %v221 = vpow.pop %v220
    %v222 = vld [vmem:[%s2] sm:$0xff]
    %v223 = vld [vmem:[%s2 + $0x8] sm:$0xff]
    %v224 = vld [vmem:[%s2 + $0x10] sm:$0xff]
    %226 = vset.pattern.permute.xlu0 0
    %227 = vperm.xlu0 %226, %v222
    %v228 = vpop.permute.xlu0 %227
    %231 = vset.pattern.permute.xlu0 0
    %232 = vperm.xlu0 %231, %v223
    %v233 = vpop.permute.xlu0 %232
    %236 = vset.pattern.permute.xlu0 0
    %237 = vperm.xlu0 %236, %v224
    %v238 = vpop.permute.xlu0 %237
    %v240 = vmul.f32 %v199, %v228
    %v241 = vmul.f32 %v201, %v228
    %v242 = vmul.f32 %v203, %v233
    %v243 = vmul.f32 %v205, %v233
    %v244 = vmul.f32 %v207, %v238
    %v245 = vmul.f32 %v209, %v238
    %v246 = vmul.f32 %v211, %v228
    %v247 = vmul.f32 %v213, %v228
    %v248 = vmul.f32 %v215, %v233
    %v249 = vmul.f32 %v217, %v233
    %v250 = vmul.f32 %v219, %v238
    %v251 = vmul.f32 %v221, %v238
    %v252 = vsel %vm125, 1, 0
    %v253 = vsel %vm126, 1, 0
    %v254 = vsel %vm127, 1, 0
    %255 = vset.pattern.permute.xlu0 0
    %256 = vperm.xlu0 %255, %v252
    %v257 = vpop.permute.xlu0 %256
    %258 = vset.pattern.permute.xlu0 0
    %259 = vperm.xlu0 %258, %v253
    %v260 = vpop.permute.xlu0 %259
    %261 = vset.pattern.permute.xlu0 0
    %262 = vperm.xlu0 %261, %v254
    %v263 = vpop.permute.xlu0 %262
    %vm264 = vcmp.eq.s32.totalorder %v257, 1
    %vm265 = vcmp.eq.s32.totalorder %v260, 1
    %vm266 = vcmp.eq.s32.totalorder %v263, 1
    %v267 = vsel %vm264, %v240, %v93
    %v268 = vsel %vm264, %v241, %v95
    %v269 = vsel %vm265, %v242, %v97
    %v270 = vsel %vm265, %v243, %v99
    %v271 = vsel %vm266, %v244, %v101
    %v272 = vsel %vm266, %v245, %v103
    %v273 = vsel %vm264, %v246, %v105
    %v274 = vsel %vm264, %v247, %v107
    %v275 = vsel %vm265, %v248, %v109
    %v276 = vsel %vm265, %v249, %v111
    %v277 = vsel %vm266, %v250, %v113
    %v278 = vsel %vm266, %v251, %v115
    %v279 = vsel %vm122, 1, 0
    %v280 = vsel %vm123, 1, 0
    %v281 = vsel %vm124, 1, 0
    %282 = vset.pattern.permute.xlu0 0
    %283 = vperm.xlu0 %282, %v279
    %v284 = vpop.permute.xlu0 %283
    %285 = vset.pattern.permute.xlu0 0
    %286 = vperm.xlu0 %285, %v280
    %v287 = vpop.permute.xlu0 %286
    %288 = vset.pattern.permute.xlu0 0
    %289 = vperm.xlu0 %288, %v281
    %v290 = vpop.permute.xlu0 %289
    %vm291 = vcmp.eq.s32.totalorder %v284, 1
    %vm292 = vcmp.eq.s32.totalorder %v287, 1
    %vm293 = vcmp.eq.s32.totalorder %v290, 1
    %v294 = vsel %vm291, %v186, %v267
    %v295 = vsel %vm291, %v187, %v268
    %v296 = vsel %vm292, %v188, %v269
    %v297 = vsel %vm292, %v189, %v270
    %v298 = vsel %vm293, %v190, %v271
    %v299 = vsel %vm293, %v191, %v272
    %v300 = vsel %vm291, %v192, %v273
    %v301 = vsel %vm291, %v193, %v274
    %v302 = vsel %vm292, %v194, %v275
    %v303 = vsel %vm292, %v195, %v276
    %v304 = vsel %vm293, %v196, %v277
    %v305 = vsel %vm293, %v197, %v278
    %306 = vst [vmem:[#allocation5] sm:$0xff] %v294
    %307 = vst [vmem:[#allocation5 + $0x8] sm:$0xff] %v295
    %308 = vst [vmem:[#allocation5 + $0x10] sm:$0xff] %v296
    %309 = vst [vmem:[#allocation5 + $0x18] sm:$0xff] %v297
    %310 = vst [vmem:[#allocation5 + $0x20] sm:$0xff] %v298
    %311 = vst [vmem:[#allocation5 + $0x28] sm:$0xff] %v299
    %312 = vst [vmem:[#allocation5 + $0x30] sm:$0xff] %v300
    %313 = vst [vmem:[#allocation5 + $0x38] sm:$0xff] %v301
    %314 = vst [vmem:[#allocation5 + $0x40] sm:$0xff] %v302
    %315 = vst [vmem:[#allocation5 + $0x48] sm:$0xff] %v303
    %316 = vst [vmem:[#allocation5 + $0x50] sm:$0xff] %v304
    %317 = vst [vmem:[#allocation5 + $0x58] sm:$0xff] %v305
    // Predicated region
    $region22: #{tpu_custom_call.1} parent=1 // pred_check
      _
    $region23: #{tpu_custom_call.1} parent=1 // pred_check_branch
      %319 = sbr.rel (0) target = $region25
    $region24: #{tpu_custom_call.1} parent=1 // pred_region
      %s321 = ssub.s32 1536, 1536
      %322 = vsyncadd [#allocation4], %s321
      %s323 = sshll.u32 [#allocation5], 4
      %s324 = int_to_ptr.vmem [resolvable:$true] %s323
      %329 = dma.vmem_to_hbm [thread:$0]  %s324, 1536, %s4, [#allocation4], 256, 256, 16
    $region25: #{tpu_custom_call.1} parent=1 // pred_fallthru
      _
    // Predicated region
    $region26: #{tpu_custom_call.1} parent=1 // pred_check
      _
    $region27: #{tpu_custom_call.1} parent=1 // pred_check_branch
      %331 = sbr.rel (0) target = $region29
    $region28: #{tpu_custom_call.1} parent=1 // pred_region
      %332 = dma.done [#allocation4], 1536
    $region29: #{tpu_custom_call.1} parent=1 // pred_fallthru
      _
    %333 = vsyncpa [#allocation3], 1
    %334 = vsyncpa [#allocation4], 1

</llo_original>
